<compile_context>
chip_gen: v7x
topology: tpu7x:2x2x1
jax: 0.10.0
libtpu: 0.0.40
codegen_flags: <defaults>
</compile_context>

<pallas_src>
import functools

import jax
import jax.numpy as jnp
from jax import lax
from jax.experimental import pallas as pl
from jax.experimental.pallas import tpu as pltpu

# ---------------------------------------------------------------------------
# Model configuration (synthetic stand-ins for the external globals).
# ---------------------------------------------------------------------------
INPUT_DIM = 16                      # len(USE_X_INPUTS_MLB)
HIDDEN_LAYERS = [INPUT_DIM * 2, INPUT_DIM * 1, INPUT_DIM * 2, INPUT_DIM * 1]
OUTPUT_DIM = 1
BN_EPS = 1e-5
# Per-layer feature flags (memory / noise / dropout off -> inference path).
LAYERS = [{"memory": 0, "noise": 0, "norm": 1, "dropout": 0}
          for _ in HIDDEN_LAYERS]


# ---------------------------------------------------------------------------
# Pallas kernel: fused forward pass.
#   x_ref   : [TILE_B, INPUT_DIM]  (batch-major block straight from HBM)
#   refs    : w0,b0, w1,b1, ..., w_end,b_end, out_ref
#             w_i: [out_i, in_i]   b_i: [out_i, 1]   (BN folded in)
#   out_ref : [OUTPUT_DIM, TILE_B] (lane-dense output slab)
# ---------------------------------------------------------------------------
def net_fwd_kernel(x_ref, *refs):
    out_ref = refs[-1]
    wb = refs[:-1]
    n_hidden = (len(wb) - 2) // 2

    # bf16-streamed x is upcast here; all compute stays f32 (v5e-safe VPU).
    x = x_ref[...].astype(jnp.float32)                    # [TILE_B, F]

    # First layer as an NT matmul: contract the last dim of both operands
    # (same dimension_numbers as q @ k^T in flash attention).  Result is
    # feature-major [out0, TILE_B]; no explicit transpose of x materialized.
    h = lax.dot_general(wb[0][...], x, (((1,), (1,)), ((), ())),
                        preferred_element_type=jnp.float32) + wb[1][...]
    h = jnp.maximum(h, 0.0)

    # Remaining hidden layers: plain [out,in] @ [in,TILE_B] + bias + ReLU.
    for li in range(1, n_hidden):
        w, b = wb[2 * li], wb[2 * li + 1]
        h = jnp.dot(w[...], h, preferred_element_type=jnp.float32) + b[...]
        h = jnp.maximum(h, 0.0)

    we, be = wb[-2], wb[-1]
    out_ref[...] = (jnp.dot(we[...], h, preferred_element_type=jnp.float32)
                    + be[...])


# ---------------------------------------------------------------------------
# Parameter prep (call ONCE, outside the per-inference path): transpose
# torch-style [in, out] weights to [out, in] and fold each layer's eval-mode
# BatchNorm affine into the *next* Linear:
#   W_{i+1} @ (s_i * h + t_i) + b_{i+1}
#     = (W_{i+1} * s_i) @ h + (W_{i+1} @ t_i + b_{i+1})
# (ReLU precedes BN in the torch model, so this fold is exact.)
# ---------------------------------------------------------------------------
def prep_kernel_params(params):
    hidden = params["hidden"]
    ws = [p["w"].T for p in hidden]            # [out, in]
    bs = [p["b"].T for p in hidden]            # [out, 1]
    we = params["end"]["w"].T                  # [OUTPUT_DIM, in]
    be = params["end"]["b"].T                  # [OUTPUT_DIM, 1]
    for i, p in enumerate(hidden):
        s = p["scale"][0]                      # [out_i]
        t = p["shift"].T                       # [out_i, 1]
        if i + 1 < len(hidden):
            bs[i + 1] = ws[i + 1] @ t + bs[i + 1]   # uses pre-scale W
            ws[i + 1] = ws[i + 1] * s[None, :]
        else:
            be = we @ t + be
            we = we * s[None, :]
    return tuple(ws), tuple(bs), we, be


# ---------------------------------------------------------------------------
# Tile selection: big tiles to amortize per-step overhead, but always >= 2
# grid steps when B > 128 so the "parallel" axis shards across v7x's 2 TCs.
# ---------------------------------------------------------------------------
def _pick_tile_b(batch, tile_b):
    if tile_b is not None:
        return int(tile_b)
    if batch <= 128:
        return 128
    half = -(-batch // 2)                      # ceil(B / 2)
    t = ((half + 127) // 128) * 128            # round up to lane multiple
    return min(t, 4096)                        # x double-buffer <= 2*256 KiB


@functools.partial(jax.jit, static_argnums=(2,))
def _net_forward_folded(x, folded, tile_b):
    ws, bs, we, be = folded
    batch = x.shape[0]
    grid = (pl.cdiv(batch, tile_b),)

    # x batch-major in HBM; last dim == full array dim (16) so the block is
    # legal.  Partial last block: OOB reads only feed OOB output columns,
    # whose writes are dropped.
    x_spec = pl.BlockSpec((tile_b, INPUT_DIM), lambda i: (i, 0))
    out_spec = pl.BlockSpec((OUTPUT_DIM, tile_b), lambda i: (0, i))

    def resident(a):
        # Full-array block, same block index every step -> stays in VMEM.
        return pl.BlockSpec(a.shape, lambda i: (0, 0))

    flat_args = [x]
    in_specs = [x_spec]
    for w, b in zip(ws, bs):
        flat_args += [w, b]
        in_specs += [resident(w), resident(b)]
    flat_args += [we, be]
    in_specs += [resident(we), resident(be)]

    flops = 2 * batch * sum(int(w.shape[0]) * int(w.shape[1])
                            for w in (*ws, we))
    bytes_accessed = (int(x.size) * x.dtype.itemsize
                      + 4 * batch * OUTPUT_DIM
                      + 4 * sum(int(a.size) for a in flat_args[1:]))

    out = pl.pallas_call(
        net_fwd_kernel,
        out_shape=jax.ShapeDtypeStruct((OUTPUT_DIM, batch), jnp.float32),
        grid=grid,
        in_specs=in_specs,
        out_specs=out_spec,
        compiler_params=pltpu.CompilerParams(
            dimension_semantics=("parallel",),
            vmem_limit_bytes=32 * 1024 * 1024,
        ),
        cost_estimate=pl.CostEstimate(flops=flops, transcendentals=0,
                                      bytes_accessed=bytes_accessed),
    )(*flat_args)

    # Back to torch's [B, OUTPUT_DIM] convention (tiny [1,B] -> [B,1]).
    return out.T


def net_forward(x, folded, *, tile_b=None, stream_dtype=None):
    """Fused Net forward.  `folded` = prep_kernel_params(params) (hoisted).

    stream_dtype=jnp.bfloat16 halves the x HBM stream (the only stream that
    scales with B); compute stays f32 inside the kernel.
    """
    if stream_dtype is not None:
        x = x.astype(stream_dtype)
    tile_b = _pick_tile_b(x.shape[0], tile_b)
    return _net_forward_folded(x, folded, tile_b)


# ---------------------------------------------------------------------------
# Deterministic parameter initialization (shapes from Net.__init__).
# ---------------------------------------------------------------------------
def init_params(key):
    params = {"hidden": []}
    dims_in = [INPUT_DIM] + HIDDEN_LAYERS[:-1]
    dims_out = HIDDEN_LAYERS
    for i, (din, dout) in enumerate(zip(dims_in, dims_out)):
        key, kw, kb, kg, kbeta, km, kv = jax.random.split(key, 7)
        w = jax.random.normal(kw, (din, dout), jnp.float32) * (1.0 / jnp.sqrt(din))
        b = jax.random.normal(kb, (1, dout), jnp.float32) * 0.01
        layer = {"w": w, "b": b}
        if LAYERS[i]["norm"] > 0:
            gamma = 1.0 + 0.1 * jax.random.normal(kg, (1, dout), jnp.float32)
            beta = 0.1 * jax.random.normal(kbeta, (1, dout), jnp.float32)
            running_mean = 0.1 * jax.random.normal(km, (1, dout), jnp.float32)
            running_var = 1.0 + 0.1 * jax.random.uniform(kv, (1, dout), jnp.float32)
            scale = gamma / jnp.sqrt(running_var + BN_EPS)
            shift = beta - running_mean * scale
        else:
            scale = jnp.ones((1, dout), jnp.float32)
            shift = jnp.zeros((1, dout), jnp.float32)
        layer["scale"] = scale
        layer["shift"] = shift
        params["hidden"].append(layer)

    key, kw, kb = jax.random.split(key, 3)
    params["end"] = {
        "w": jax.random.normal(kw, (HIDDEN_LAYERS[-1], OUTPUT_DIM), jnp.float32)
             * (1.0 / jnp.sqrt(HIDDEN_LAYERS[-1])),
        "b": jax.random.normal(kb, (1, OUTPUT_DIM), jnp.float32) * 0.01,
    }
    return params


# Pure-JAX reference (unfolded params, torch layer ordering: Linear->ReLU->BN).
def net_forward_ref(x, params):
    h = x
    for p in params["hidden"]:
        h = jnp.maximum(h @ p["w"] + p["b"], 0.0)
        h = h * p["scale"] + p["shift"]
    return h @ params["end"]["w"] + params["end"]["b"]


if __name__ == "__main__":
    key = jax.random.PRNGKey(0)
    key, kx, kp = jax.random.split(key, 3)

    # Small batch that still exercises >=2 grid steps and a partial last tile.
    B = 200
    x = jax.random.normal(kx, (B, INPUT_DIM), jnp.float32)
    params = init_params(kp)
    folded = prep_kernel_params(params)     # BN fold / transposes hoisted: once

    # f32 streaming path (tight check).
    out = jax.block_until_ready(net_forward(x, folded))
    ref = net_forward_ref(x, params)
    assert out.shape == (B, OUTPUT_DIM)
    assert jnp.allclose(out, ref, atol=1e-3, rtol=1e-3), "f32 mismatch vs JAX reference"

    # bf16 x-streaming path (half the x HBM traffic; compute stays f32).
    out_bf16 = jax.block_until_ready(
        net_forward(x, folded, stream_dtype=jnp.bfloat16))
    ref_bf16 = net_forward_ref(x.astype(jnp.bfloat16).astype(jnp.float32), params)
    assert jnp.allclose(out_bf16, ref_bf16, atol=2e-3, rtol=2e-3), \
        "bf16-stream mismatch vs JAX reference"

    print("KERNEL_OK")
</pallas_src>

<mosaic_0001>
module attributes {stable_mosaic.version = 11 : i64} {
  func.func @net_fwd_kernel(%arg0: i32, %arg1: memref<128x16xf32, #tpu.memory_space<vmem>>, %arg2: memref<32x16xf32, #tpu.memory_space<vmem>>, %arg3: memref<32x1xf32, #tpu.memory_space<vmem>>, %arg4: memref<16x32xf32, #tpu.memory_space<vmem>>, %arg5: memref<16x1xf32, #tpu.memory_space<vmem>>, %arg6: memref<32x16xf32, #tpu.memory_space<vmem>>, %arg7: memref<32x1xf32, #tpu.memory_space<vmem>>, %arg8: memref<16x32xf32, #tpu.memory_space<vmem>>, %arg9: memref<16x1xf32, #tpu.memory_space<vmem>>, %arg10: memref<1x16xf32, #tpu.memory_space<vmem>>, %arg11: memref<1x1xf32, #tpu.memory_space<vmem>>, %arg12: memref<1x128xf32, #tpu.memory_space<vmem>>) attributes {dimension_semantics = [#tpu.dimension_semantics<parallel>], iteration_bounds = array<i64: 2>, scalar_prefetch = 0 : i64, scratch_operands = 0 : i64, tpu.core_type = #tpu.core_type<tc>, window_params = [{transform_indices = @transform_0, window_bounds = array<i64: 128, 16>}, {pipeline_mode = #tpu.pipeline_mode<synchronous>, transform_indices = @transform_1, window_bounds = array<i64: 32, 16>}, {pipeline_mode = #tpu.pipeline_mode<synchronous>, transform_indices = @transform_2, window_bounds = array<i64: 32, 1>}, {pipeline_mode = #tpu.pipeline_mode<synchronous>, transform_indices = @transform_3, window_bounds = array<i64: 16, 32>}, {pipeline_mode = #tpu.pipeline_mode<synchronous>, transform_indices = @transform_4, window_bounds = array<i64: 16, 1>}, {pipeline_mode = #tpu.pipeline_mode<synchronous>, transform_indices = @transform_5, window_bounds = array<i64: 32, 16>}, {pipeline_mode = #tpu.pipeline_mode<synchronous>, transform_indices = @transform_6, window_bounds = array<i64: 32, 1>}, {pipeline_mode = #tpu.pipeline_mode<synchronous>, transform_indices = @transform_7, window_bounds = array<i64: 16, 32>}, {pipeline_mode = #tpu.pipeline_mode<synchronous>, transform_indices = @transform_8, window_bounds = array<i64: 16, 1>}, {pipeline_mode = #tpu.pipeline_mode<synchronous>, transform_indices = @transform_9, window_bounds = array<i64: 1, 16>}, {pipeline_mode = #tpu.pipeline_mode<synchronous>, transform_indices = @transform_10, window_bounds = array<i64: 1, 1>}, {transform_indices = @transform_11, window_bounds = array<i64: 1, 128>}]} {
    %c0 = arith.constant 0 : index
    %c0_0 = arith.constant 0 : index
    %0 = vector.load %arg1[%c0, %c0_0] : memref<128x16xf32, #tpu.memory_space<vmem>>, vector<128x16xf32>
    %c0_1 = arith.constant 0 : index
    %c0_2 = arith.constant 0 : index
    %1 = vector.load %arg2[%c0_1, %c0_2] : memref<32x16xf32, #tpu.memory_space<vmem>>, vector<32x16xf32>
    %cst = arith.constant dense<0.000000e+00> : vector<32x128xf32>
    %2 = tpu.matmul %1, %0, %cst {dimension_numbers = #tpu.dot_dimension_numbers<[1], [1], [0], [0], [0, 0, 1, 0], [], []>} : vector<32x16xf32>, vector<128x16xf32>, vector<32x128xf32> -> vector<32x128xf32>
    %c0_3 = arith.constant 0 : index
    %c0_4 = arith.constant 0 : index
    %3 = vector.load %arg3[%c0_3, %c0_4] : memref<32x1xf32, #tpu.memory_space<vmem>>, vector<32x1xf32>
    %4 = vector.broadcast %3 : vector<32x1xf32> to vector<32x128xf32>
    %5 = arith.addf %2, %4 : vector<32x128xf32>
    %cst_5 = arith.constant 0.000000e+00 : f32
    %6 = vector.broadcast %cst_5 : f32 to vector<32x128xf32>
    %7 = arith.maximumf %5, %6 : vector<32x128xf32>
    %c0_6 = arith.constant 0 : index
    %c0_7 = arith.constant 0 : index
    %8 = vector.load %arg4[%c0_6, %c0_7] : memref<16x32xf32, #tpu.memory_space<vmem>>, vector<16x32xf32>
    %cst_8 = arith.constant dense<0.000000e+00> : vector<16x128xf32>
    %9 = tpu.matmul %8, %7, %cst_8 {dimension_numbers = #tpu.dot_dimension_numbers<[1], [0], [0], [1], [0, 0, 1, 1], [], []>} : vector<16x32xf32>, vector<32x128xf32>, vector<16x128xf32> -> vector<16x128xf32>
    %c0_9 = arith.constant 0 : index
    %c0_10 = arith.constant 0 : index
    %10 = vector.load %arg5[%c0_9, %c0_10] : memref<16x1xf32, #tpu.memory_space<vmem>>, vector<16x1xf32>
    %11 = vector.broadcast %10 : vector<16x1xf32> to vector<16x128xf32>
    %12 = arith.addf %9, %11 : vector<16x128xf32>
    %cst_11 = arith.constant 0.000000e+00 : f32
    %13 = vector.broadcast %cst_11 : f32 to vector<16x128xf32>
    %14 = arith.maximumf %12, %13 : vector<16x128xf32>
    %c0_12 = arith.constant 0 : index
    %c0_13 = arith.constant 0 : index
    %15 = vector.load %arg6[%c0_12, %c0_13] : memref<32x16xf32, #tpu.memory_space<vmem>>, vector<32x16xf32>
    %cst_14 = arith.constant dense<0.000000e+00> : vector<32x128xf32>
    %16 = tpu.matmul %15, %14, %cst_14 {dimension_numbers = #tpu.dot_dimension_numbers<[1], [0], [0], [1], [0, 0, 1, 1], [], []>} : vector<32x16xf32>, vector<16x128xf32>, vector<32x128xf32> -> vector<32x128xf32>
    %c0_15 = arith.constant 0 : index
    %c0_16 = arith.constant 0 : index
    %17 = vector.load %arg7[%c0_15, %c0_16] : memref<32x1xf32, #tpu.memory_space<vmem>>, vector<32x1xf32>
    %18 = vector.broadcast %17 : vector<32x1xf32> to vector<32x128xf32>
    %19 = arith.addf %16, %18 : vector<32x128xf32>
    %cst_17 = arith.constant 0.000000e+00 : f32
    %20 = vector.broadcast %cst_17 : f32 to vector<32x128xf32>
    %21 = arith.maximumf %19, %20 : vector<32x128xf32>
    %c0_18 = arith.constant 0 : index
    %c0_19 = arith.constant 0 : index
    %22 = vector.load %arg8[%c0_18, %c0_19] : memref<16x32xf32, #tpu.memory_space<vmem>>, vector<16x32xf32>
    %cst_20 = arith.constant dense<0.000000e+00> : vector<16x128xf32>
    %23 = tpu.matmul %22, %21, %cst_20 {dimension_numbers = #tpu.dot_dimension_numbers<[1], [0], [0], [1], [0, 0, 1, 1], [], []>} : vector<16x32xf32>, vector<32x128xf32>, vector<16x128xf32> -> vector<16x128xf32>
    %c0_21 = arith.constant 0 : index
    %c0_22 = arith.constant 0 : index
    %24 = vector.load %arg9[%c0_21, %c0_22] : memref<16x1xf32, #tpu.memory_space<vmem>>, vector<16x1xf32>
    %25 = vector.broadcast %24 : vector<16x1xf32> to vector<16x128xf32>
    %26 = arith.addf %23, %25 : vector<16x128xf32>
    %cst_23 = arith.constant 0.000000e+00 : f32
    %27 = vector.broadcast %cst_23 : f32 to vector<16x128xf32>
    %28 = arith.maximumf %26, %27 : vector<16x128xf32>
    %c0_24 = arith.constant 0 : index
    %c0_25 = arith.constant 0 : index
    %29 = vector.load %arg10[%c0_24, %c0_25] : memref<1x16xf32, #tpu.memory_space<vmem>>, vector<1x16xf32>
    %cst_26 = arith.constant dense<0.000000e+00> : vector<1x128xf32>
    %30 = tpu.matmul %29, %28, %cst_26 {dimension_numbers = #tpu.dot_dimension_numbers<[1], [0], [0], [1], [0, 0, 1, 1], [], []>} : vector<1x16xf32>, vector<16x128xf32>, vector<1x128xf32> -> vector<1x128xf32>
    %c0_27 = arith.constant 0 : index
    %c0_28 = arith.constant 0 : index
    %31 = vector.load %arg11[%c0_27, %c0_28] : memref<1x1xf32, #tpu.memory_space<vmem>>, vector<1x1xf32>
    %32 = vector.broadcast %31 : vector<1x1xf32> to vector<1x128xf32>
    %33 = arith.addf %30, %32 : vector<1x128xf32>
    %c0_29 = arith.constant 0 : index
    %c0_30 = arith.constant 0 : index
    %34 = vector.load %arg12[%c0_29, %c0_30] : memref<1x128xf32, #tpu.memory_space<vmem>>, vector<1x128xf32>
    tpu.vector_store %arg12[%c0_29, %c0_30], %33 {strides = array<i32>} : memref<1x128xf32, #tpu.memory_space<vmem>>, vector<1x128xf32>,
    return
  }
  func.func @transform_0(%arg0: i32) -> (i32, i32) {
    %c0_i32 = arith.constant 0 : i32
    %c0_i32_0 = arith.constant 0 : i32
    return %arg0, %c0_i32 : i32, i32
  }
  func.func @transform_1(%arg0: i32) -> (i32, i32) {
    %c0_i32 = arith.constant 0 : i32
    %c0_i32_0 = arith.constant 0 : i32
    %c0_i32_1 = arith.constant 0 : i32
    return %c0_i32, %c0_i32_0 : i32, i32
  }
  func.func @transform_2(%arg0: i32) -> (i32, i32) {
    %c0_i32 = arith.constant 0 : i32
    %c0_i32_0 = arith.constant 0 : i32
    %c0_i32_1 = arith.constant 0 : i32
    return %c0_i32, %c0_i32_0 : i32, i32
  }
  func.func @transform_3(%arg0: i32) -> (i32, i32) {
    %c0_i32 = arith.constant 0 : i32
    %c0_i32_0 = arith.constant 0 : i32
    %c0_i32_1 = arith.constant 0 : i32
    return %c0_i32, %c0_i32_0 : i32, i32
  }
  func.func @transform_4(%arg0: i32) -> (i32, i32) {
    %c0_i32 = arith.constant 0 : i32
    %c0_i32_0 = arith.constant 0 : i32
    %c0_i32_1 = arith.constant 0 : i32
    return %c0_i32, %c0_i32_0 : i32, i32
  }
  func.func @transform_5(%arg0: i32) -> (i32, i32) {
    %c0_i32 = arith.constant 0 : i32
    %c0_i32_0 = arith.constant 0 : i32
    %c0_i32_1 = arith.constant 0 : i32
    return %c0_i32, %c0_i32_0 : i32, i32
  }
  func.func @transform_6(%arg0: i32) -> (i32, i32) {
    %c0_i32 = arith.constant 0 : i32
    %c0_i32_0 = arith.constant 0 : i32
    %c0_i32_1 = arith.constant 0 : i32
    return %c0_i32, %c0_i32_0 : i32, i32
  }
  func.func @transform_7(%arg0: i32) -> (i32, i32) {
    %c0_i32 = arith.constant 0 : i32
    %c0_i32_0 = arith.constant 0 : i32
    %c0_i32_1 = arith.constant 0 : i32
    return %c0_i32, %c0_i32_0 : i32, i32
  }
  func.func @transform_8(%arg0: i32) -> (i32, i32) {
    %c0_i32 = arith.constant 0 : i32
    %c0_i32_0 = arith.constant 0 : i32
    %c0_i32_1 = arith.constant 0 : i32
    return %c0_i32, %c0_i32_0 : i32, i32
  }
  func.func @transform_9(%arg0: i32) -> (i32, i32) {
    %c0_i32 = arith.constant 0 : i32
    %c0_i32_0 = arith.constant 0 : i32
    %c0_i32_1 = arith.constant 0 : i32
    return %c0_i32, %c0_i32_0 : i32, i32
  }
  func.func @transform_10(%arg0: i32) -> (i32, i32) {
    %c0_i32 = arith.constant 0 : i32
    %c0_i32_0 = arith.constant 0 : i32
    %c0_i32_1 = arith.constant 0 : i32
    return %c0_i32, %c0_i32_0 : i32, i32
  }
  func.func @transform_11(%arg0: i32) -> (i32, i32) {
    %c0_i32 = arith.constant 0 : i32
    %c0_i32_0 = arith.constant 0 : i32
    return %c0_i32, %arg0 : i32, i32
  }
}

</mosaic_0001>

<llo_original>
// kernel: _net_forward_folded.1
$region0: #{_net_forward_folded.1}
  #allocation0 [shape = 'u32[]', space=smem, size = 0x4, offset = 0x4, fixed_abs, tag = 'smem constant byte address 0x4 - core index']
  #allocation1 [shape = 'u32[144,128]{1,0:T(1,128)}', space=vmem, size = 0x12000, scoped, tag = 'internal scratch']
  #allocation2 [shape = 'f32[1,1]{1,0:T(1,128)S(1)}', space=vmem, size = 0x200, scoped, tag = 'scoped memory for _net_forward_folded.1']
  %s0 = inlined_call_operand.vmem [shape: f32[200,16], index: 0, kind: input, shape index: {}]
  %s1 = inlined_call_operand.vmem [shape: f32[32,16], index: 1, kind: input, shape index: {}]
  %s2 = inlined_call_operand.vmem [shape: f32[32,1], index: 2, kind: input, shape index: {}]
  %s3 = inlined_call_operand.vmem [shape: f32[16,32], index: 3, kind: input, shape index: {}]
  %s4 = inlined_call_operand.vmem [shape: f32[16,1], index: 4, kind: input, shape index: {}]
  %s5 = inlined_call_operand.vmem [shape: f32[32,16], index: 5, kind: input, shape index: {}]
  %s6 = inlined_call_operand.vmem [shape: f32[32,1], index: 6, kind: input, shape index: {}]
  %s7 = inlined_call_operand.vmem [shape: f32[16,32], index: 7, kind: input, shape index: {}]
  %s8 = inlined_call_operand.vmem [shape: f32[16,1], index: 8, kind: input, shape index: {}]
  %s9 = inlined_call_operand.vmem [shape: f32[1,16], index: 9, kind: input, shape index: {}]
  %s10 = inlined_call_operand.<no memory space> [shape: f32[1,1], index: 10, kind: input, shape index: {}]
  %s11 = inlined_call_operand.hbm [shape: f32[1,200], index: 11, kind: output, shape index: {}]
  %s12 = sld [smem:[#allocation0]]
  $region77: #{_net_forward_folded.1} parent=0
    _
  %s14 = ssub.s32 1, %s12
  %s15 = scalar_select 0, %s14, %s12
  %v16 = vstv %s10
  %17 = vst [vmem:[#allocation2] sm:$0x1] %v16
  $region1: #{_net_forward_folded.1} parent=0
    #allocation3 [shape = 'u8[1024]{0}', space=vmem, size = 0x400, scoped, tag = 'output window, operand 0']
    #allocation4 [shape = 's32[2]{0}', space=sflag, size = 0x8, scoped, tag = 'scoped memory for _net_forward_folded.1']
    %18 = vsyncpa [#allocation4], 0
    %s19 = scalar_lea.sflag [#allocation4], 1
    %20 = vsyncpa %s19, 0
    loop: start=0, step=1, limit=4
    $region2: #{_net_forward_folded.1} parent=1 // loop_pre_header
      _
    $region3: #{_net_forward_folded.1} parent=1 // loop_header
      %s22 = sphi 0, %s26
      %p23 = scmp.ge.s32.totalorder %s22, 4
      %s32 = sphi 0, %s34
      %s35 = sphi 0, %s32
      %s36 = sphi 0, %s35
      %s52 = sphi 0, %s36
      %s56 = sphi 0, %s56
      %s58 = sphi 0, %s56
      %s59 = sphi 0, %s58
      %s73 = sphi 0, %s59
      %s77 = sphi 0, %s77
      %s79 = sphi 0, %s77
      %s80 = sphi 0, %s79
      %s94 = sphi 0, %s80
      %s98 = sphi 0, %s98
      %s100 = sphi 0, %s98
      %s101 = sphi 0, %s100
      %s115 = sphi 0, %s101
      %s119 = sphi 0, %s119
      %s121 = sphi 0, %s119
      %s122 = sphi 0, %s121
      %s136 = sphi 0, %s122
      %s140 = sphi 0, %s140
      %s142 = sphi 0, %s140
      %s143 = sphi 0, %s142
      %s157 = sphi 0, %s143
      %s161 = sphi 0, %s161
      %s163 = sphi 0, %s161
      %s164 = sphi 0, %s163
      %s178 = sphi 0, %s164
      %s182 = sphi 0, %s182
      %s184 = sphi 0, %s182
      %s185 = sphi 0, %s184
      %s199 = sphi 0, %s185
      %s203 = sphi 0, %s203
      %s205 = sphi 0, %s203
      %s206 = sphi 0, %s205
      %s220 = sphi 0, %s206
      %s224 = sphi 0, %s224
      %s226 = sphi 0, %s224
      %s227 = sphi 0, %s226
      %s241 = sphi 0, %s227
      %s245 = sphi 0, %s245
      %s247 = sphi 0, %s245
      %s248 = sphi 0, %s247
      %s262 = sphi 0, %s248
      %s268 = sphi 0, %s270
      %s271 = sphi 0, %s268
      %s272 = sphi 0, %s271
      %s288 = sphi 0, %s272
    $region4: #{_net_forward_folded.1} parent=1 // loop_header_branch
      %25 = sbr.rel (%p23) target = $region8
    $region5: #{_net_forward_folded.1} parent=1 // loop_body
      %s27 = ssub.s32 %s22, 1
      %s28 = ssub.s32 %s22, 2
      %s29 = sadd.s32 %s22, 1
      %s30 = ssub.s32 %s22, %s29
      %p31 = scmp.eq.s32.totalorder %s30, 0
      %s33 = sadd.s32 %s32, 1
      %s34 = scalar_select %p31, %s32, %s33
      %p37 = pneg %p31
      %p38 = scmp.eq.s32.totalorder %s22, 1
      %p39 = por %p37, %p38
      %p40 = scmp.ne.s32.totalorder %s32, %s35
      %p41 = scmp.eq.s32.totalorder %s22, 0
      %p42 = por %p40, %p41
      %p43 = scmp.ne.s32.totalorder %s32, %s35
      %p44 = scmp.eq.s32.totalorder %s27, 1
      %p45 = por %p43, %p44
      %p46 = scmp.ne.s32.totalorder %s35, %s36
      %p47 = scmp.eq.s32.totalorder %s27, 0
      %p48 = por %p46, %p47
      %p49 = scmp.ne.s32.totalorder %s35, %s36
      %p50 = scmp.eq.s32.totalorder %s28, 1
      %p51 = por %p49, %p50
      %p53 = scmp.ne.s32.totalorder %s36, %s52
      %p54 = scmp.eq.s32.totalorder %s28, 0
      %p55 = por %p53, %p54
      %s57 = sadd.s32 %s56, 1
      %p60 = scmp.eq.s32.totalorder %s22, 1
      %p61 = scmp.ne.s32.totalorder %s56, %s58
      %p62 = scmp.eq.s32.totalorder %s22, 0
      %p63 = por %p61, %p62
      %p64 = scmp.ne.s32.totalorder %s56, %s58
      %p65 = scmp.eq.s32.totalorder %s27, 1
      %p66 = por %p64, %p65
      %p67 = scmp.ne.s32.totalorder %s58, %s59
      %p68 = scmp.eq.s32.totalorder %s27, 0
      %p69 = por %p67, %p68
      %p70 = scmp.ne.s32.totalorder %s58, %s59
      %p71 = scmp.eq.s32.totalorder %s28, 1
      %p72 = por %p70, %p71
      %p74 = scmp.ne.s32.totalorder %s59, %s73
      %p75 = scmp.eq.s32.totalorder %s28, 0
      %p76 = por %p74, %p75
      %s78 = sadd.s32 %s77, 1
      %p81 = scmp.eq.s32.totalorder %s22, 1
      %p82 = scmp.ne.s32.totalorder %s77, %s79
      %p83 = scmp.eq.s32.totalorder %s22, 0
      %p84 = por %p82, %p83
      %p85 = scmp.ne.s32.totalorder %s77, %s79
      %p86 = scmp.eq.s32.totalorder %s27, 1
      %p87 = por %p85, %p86
      %p88 = scmp.ne.s32.totalorder %s79, %s80
      %p89 = scmp.eq.s32.totalorder %s27, 0
      %p90 = por %p88, %p89
      %p91 = scmp.ne.s32.totalorder %s79, %s80
      %p92 = scmp.eq.s32.totalorder %s28, 1
      %p93 = por %p91, %p92
      %p95 = scmp.ne.s32.totalorder %s80, %s94
      %p96 = scmp.eq.s32.totalorder %s28, 0
      %p97 = por %p95, %p96
      %s99 = sadd.s32 %s98, 1
      %p102 = scmp.eq.s32.totalorder %s22, 1
      %p103 = scmp.ne.s32.totalorder %s98, %s100
      %p104 = scmp.eq.s32.totalorder %s22, 0
      %p105 = por %p103, %p104
      %p106 = scmp.ne.s32.totalorder %s98, %s100
      %p107 = scmp.eq.s32.totalorder %s27, 1
      %p108 = por %p106, %p107
      %p109 = scmp.ne.s32.totalorder %s100, %s101
      %p110 = scmp.eq.s32.totalorder %s27, 0
      %p111 = por %p109, %p110
      %p112 = scmp.ne.s32.totalorder %s100, %s101
      %p113 = scmp.eq.s32.totalorder %s28, 1
      %p114 = por %p112, %p113
      %p116 = scmp.ne.s32.totalorder %s101, %s115
      %p117 = scmp.eq.s32.totalorder %s28, 0
      %p118 = por %p116, %p117
      %s120 = sadd.s32 %s119, 1
      %p123 = scmp.eq.s32.totalorder %s22, 1
      %p124 = scmp.ne.s32.totalorder %s119, %s121
      %p125 = scmp.eq.s32.totalorder %s22, 0
      %p126 = por %p124, %p125
      %p127 = scmp.ne.s32.totalorder %s119, %s121
      %p128 = scmp.eq.s32.totalorder %s27, 1
      %p129 = por %p127, %p128
      %p130 = scmp.ne.s32.totalorder %s121, %s122
      %p131 = scmp.eq.s32.totalorder %s27, 0
      %p132 = por %p130, %p131
      %p133 = scmp.ne.s32.totalorder %s121, %s122
      %p134 = scmp.eq.s32.totalorder %s28, 1
      %p135 = por %p133, %p134
      %p137 = scmp.ne.s32.totalorder %s122, %s136
      %p138 = scmp.eq.s32.totalorder %s28, 0
      %p139 = por %p137, %p138
      %s141 = sadd.s32 %s140, 1
      %p144 = scmp.eq.s32.totalorder %s22, 1
      %p145 = scmp.ne.s32.totalorder %s140, %s142
      %p146 = scmp.eq.s32.totalorder %s22, 0
      %p147 = por %p145, %p146
      %p148 = scmp.ne.s32.totalorder %s140, %s142
      %p149 = scmp.eq.s32.totalorder %s27, 1
      %p150 = por %p148, %p149
      %p151 = scmp.ne.s32.totalorder %s142, %s143
      %p152 = scmp.eq.s32.totalorder %s27, 0
      %p153 = por %p151, %p152
      %p154 = scmp.ne.s32.totalorder %s142, %s143
      %p155 = scmp.eq.s32.totalorder %s28, 1
      %p156 = por %p154, %p155
      %p158 = scmp.ne.s32.totalorder %s143, %s157
      %p159 = scmp.eq.s32.totalorder %s28, 0
      %p160 = por %p158, %p159
      %s162 = sadd.s32 %s161, 1
      %p165 = scmp.eq.s32.totalorder %s22, 1
      %p166 = scmp.ne.s32.totalorder %s161, %s163
      %p167 = scmp.eq.s32.totalorder %s22, 0
      %p168 = por %p166, %p167
      %p169 = scmp.ne.s32.totalorder %s161, %s163
      %p170 = scmp.eq.s32.totalorder %s27, 1
      %p171 = por %p169, %p170
      %p172 = scmp.ne.s32.totalorder %s163, %s164
      %p173 = scmp.eq.s32.totalorder %s27, 0
      %p174 = por %p172, %p173
      %p175 = scmp.ne.s32.totalorder %s163, %s164
      %p176 = scmp.eq.s32.totalorder %s28, 1
      %p177 = por %p175, %p176
      %p179 = scmp.ne.s32.totalorder %s164, %s178
      %p180 = scmp.eq.s32.totalorder %s28, 0
      %p181 = por %p179, %p180
      %s183 = sadd.s32 %s182, 1
      %p186 = scmp.eq.s32.totalorder %s22, 1
      %p187 = scmp.ne.s32.totalorder %s182, %s184
      %p188 = scmp.eq.s32.totalorder %s22, 0
      %p189 = por %p187, %p188
      %p190 = scmp.ne.s32.totalorder %s182, %s184
      %p191 = scmp.eq.s32.totalorder %s27, 1
      %p192 = por %p190, %p191
      %p193 = scmp.ne.s32.totalorder %s184, %s185
      %p194 = scmp.eq.s32.totalorder %s27, 0
      %p195 = por %p193, %p194
      %p196 = scmp.ne.s32.totalorder %s184, %s185
      %p197 = scmp.eq.s32.totalorder %s28, 1
      %p198 = por %p196, %p197
      %p200 = scmp.ne.s32.totalorder %s185, %s199
      %p201 = scmp.eq.s32.totalorder %s28, 0
      %p202 = por %p200, %p201
      %s204 = sadd.s32 %s203, 1
      %p207 = scmp.eq.s32.totalorder %s22, 1
      %p208 = scmp.ne.s32.totalorder %s203, %s205
      %p209 = scmp.eq.s32.totalorder %s22, 0
      %p210 = por %p208, %p209
      %p211 = scmp.ne.s32.totalorder %s203, %s205
      %p212 = scmp.eq.s32.totalorder %s27, 1
      %p213 = por %p211, %p212
      %p214 = scmp.ne.s32.totalorder %s205, %s206
      %p215 = scmp.eq.s32.totalorder %s27, 0
      %p216 = por %p214, %p215
      %p217 = scmp.ne.s32.totalorder %s205, %s206
      %p218 = scmp.eq.s32.totalorder %s28, 1
      %p219 = por %p217, %p218
      %p221 = scmp.ne.s32.totalorder %s206, %s220
      %p222 = scmp.eq.s32.totalorder %s28, 0
      %p223 = por %p221, %p222
      %s225 = sadd.s32 %s224, 1
      %p228 = scmp.eq.s32.totalorder %s22, 1
      %p229 = scmp.ne.s32.totalorder %s224, %s226
      %p230 = scmp.eq.s32.totalorder %s22, 0
      %p231 = por %p229, %p230
      %p232 = scmp.ne.s32.totalorder %s224, %s226
      %p233 = scmp.eq.s32.totalorder %s27, 1
      %p234 = por %p232, %p233
      %p235 = scmp.ne.s32.totalorder %s226, %s227
      %p236 = scmp.eq.s32.totalorder %s27, 0
      %p237 = por %p235, %p236
      %p238 = scmp.ne.s32.totalorder %s226, %s227
      %p239 = scmp.eq.s32.totalorder %s28, 1
      %p240 = por %p238, %p239
      %p242 = scmp.ne.s32.totalorder %s227, %s241
      %p243 = scmp.eq.s32.totalorder %s28, 0
      %p244 = por %p242, %p243
      %s246 = sadd.s32 %s245, 1
      %p249 = scmp.eq.s32.totalorder %s22, 1
      %p250 = scmp.ne.s32.totalorder %s245, %s247
      %p251 = scmp.eq.s32.totalorder %s22, 0
      %p252 = por %p250, %p251
      %p253 = scmp.ne.s32.totalorder %s245, %s247
      %p254 = scmp.eq.s32.totalorder %s27, 1
      %p255 = por %p253, %p254
      %p256 = scmp.ne.s32.totalorder %s247, %s248
      %p257 = scmp.eq.s32.totalorder %s27, 0
      %p258 = por %p256, %p257
      %p259 = scmp.ne.s32.totalorder %s247, %s248
      %p260 = scmp.eq.s32.totalorder %s28, 1
      %p261 = por %p259, %p260
      %p263 = scmp.ne.s32.totalorder %s248, %s262
      %p264 = scmp.eq.s32.totalorder %s28, 0
      %p265 = por %p263, %p264
      %s266 = ssub.s32 %s22, %s29
      %p267 = scmp.eq.s32.totalorder %s266, 0
      %s269 = sadd.s32 %s268, 1
      %s270 = scalar_select %p267, %s268, %s269
      %p273 = pneg %p267
      %p274 = scmp.eq.s32.totalorder %s22, 1
      %p275 = por %p273, %p274
      %p276 = scmp.ne.s32.totalorder %s268, %s271
      %p277 = scmp.eq.s32.totalorder %s22, 0
      %p278 = por %p276, %p277
      %p279 = scmp.ne.s32.totalorder %s268, %s271
      %p280 = scmp.eq.s32.totalorder %s27, 1
      %p281 = por %p279, %p280
      %p282 = scmp.ne.s32.totalorder %s271, %s272
      %p283 = scmp.eq.s32.totalorder %s27, 0
      %p284 = por %p282, %p283
      %p285 = scmp.ne.s32.totalorder %s271, %s272
      %p286 = scmp.eq.s32.totalorder %s28, 1
      %p287 = por %p285, %p286
      %p289 = scmp.ne.s32.totalorder %s272, %s288
      %p290 = scmp.eq.s32.totalorder %s28, 0
      %p291 = por %p289, %p290
      %p292 = scmp.le.s32.totalorder 1, %s22
      %p293 = scmp.lt.s32.totalorder %s22, 3
      %p294 = pnand %p292, %p293
      %p295 = pneg %p294
      // Predicated region
      $region9: #{_net_forward_folded.1} parent=5 // pred_check
        _
      $region10: #{_net_forward_folded.1} parent=5 // pred_check_branch
        %297 = sbr.rel (%p294) target = $region12
      $region11: #{_net_forward_folded.1} parent=5 // pred_region
        %s298 = ssub.s32 %s22, 1
        // Predicated region
        $region13: #{_net_forward_folded.1} parent=11 // pred_check
          %p299 = pneg %p69
        $region14: #{_net_forward_folded.1} parent=11 // pred_check_branch
          %301 = sbr.rel (%p299) target = $region16
        $region15: #{_net_forward_folded.1} parent=11 // pred_region
          _
        $region16: #{_net_forward_folded.1} parent=11 // pred_fallthru
          _
        // Predicated region
        $region17: #{_net_forward_folded.1} parent=11 // pred_check
          %p302 = pneg %p90
        $region18: #{_net_forward_folded.1} parent=11 // pred_check_branch
          %304 = sbr.rel (%p302) target = $region20
        $region19: #{_net_forward_folded.1} parent=11 // pred_region
          _
        $region20: #{_net_forward_folded.1} parent=11 // pred_fallthru
          _
        // Predicated region
        $region21: #{_net_forward_folded.1} parent=11 // pred_check
          %p305 = pneg %p111
        $region22: #{_net_forward_folded.1} parent=11 // pred_check_branch
          %307 = sbr.rel (%p305) target = $region24
        $region23: #{_net_forward_folded.1} parent=11 // pred_region
          _
        $region24: #{_net_forward_folded.1} parent=11 // pred_fallthru
          _
        // Predicated region
        $region25: #{_net_forward_folded.1} parent=11 // pred_check
          %p308 = pneg %p132
        $region26: #{_net_forward_folded.1} parent=11 // pred_check_branch
          %310 = sbr.rel (%p308) target = $region28
        $region27: #{_net_forward_folded.1} parent=11 // pred_region
          _
        $region28: #{_net_forward_folded.1} parent=11 // pred_fallthru
          _
        // Predicated region
        $region29: #{_net_forward_folded.1} parent=11 // pred_check
          %p311 = pneg %p153
        $region30: #{_net_forward_folded.1} parent=11 // pred_check_branch
          %313 = sbr.rel (%p311) target = $region32
        $region31: #{_net_forward_folded.1} parent=11 // pred_region
          _
        $region32: #{_net_forward_folded.1} parent=11 // pred_fallthru
          _
        // Predicated region
        $region33: #{_net_forward_folded.1} parent=11 // pred_check
          %p314 = pneg %p174
        $region34: #{_net_forward_folded.1} parent=11 // pred_check_branch
          %316 = sbr.rel (%p314) target = $region36
        $region35: #{_net_forward_folded.1} parent=11 // pred_region
          _
        $region36: #{_net_forward_folded.1} parent=11 // pred_fallthru
          _
        // Predicated region
        $region37: #{_net_forward_folded.1} parent=11 // pred_check
          %p317 = pneg %p195
        $region38: #{_net_forward_folded.1} parent=11 // pred_check_branch
          %319 = sbr.rel (%p317) target = $region40
        $region39: #{_net_forward_folded.1} parent=11 // pred_region
          _
        $region40: #{_net_forward_folded.1} parent=11 // pred_fallthru
          _
        // Predicated region
        $region41: #{_net_forward_folded.1} parent=11 // pred_check
          %p320 = pneg %p216
        $region42: #{_net_forward_folded.1} parent=11 // pred_check_branch
          %322 = sbr.rel (%p320) target = $region44
        $region43: #{_net_forward_folded.1} parent=11 // pred_region
          _
        $region44: #{_net_forward_folded.1} parent=11 // pred_fallthru
          _
        // Predicated region
        $region45: #{_net_forward_folded.1} parent=11 // pred_check
          %p323 = pneg %p237
        $region46: #{_net_forward_folded.1} parent=11 // pred_check_branch
          %325 = sbr.rel (%p323) target = $region48
        $region47: #{_net_forward_folded.1} parent=11 // pred_region
          _
        $region48: #{_net_forward_folded.1} parent=11 // pred_fallthru
          _
        // Predicated region
        $region49: #{_net_forward_folded.1} parent=11 // pred_check
          %p326 = pneg %p258
        $region50: #{_net_forward_folded.1} parent=11 // pred_check_branch
          %328 = sbr.rel (%p326) target = $region52
        $region51: #{_net_forward_folded.1} parent=11 // pred_region
          _
        $region52: #{_net_forward_folded.1} parent=11 // pred_fallthru
          _
      $region12: #{_net_forward_folded.1} parent=5 // pred_fallthru
        _
      %p329 = scmp.lt.s32.totalorder %s22, 2
      // Predicated region
      $region53: #{_net_forward_folded.1} parent=5 // pred_check
        %p330 = pneg %p329
      $region54: #{_net_forward_folded.1} parent=5 // pred_check_branch
        %332 = sbr.rel (%p330) target = $region56
      $region55: #{_net_forward_folded.1} parent=5 // pred_region
        // Predicated region
        $region57: #{_net_forward_folded.1} parent=55 // pred_check
          %p333 = pneg %p42
        $region58: #{_net_forward_folded.1} parent=55 // pred_check_branch
          %335 = sbr.rel (%p333) target = $region60
        $region59: #{_net_forward_folded.1} parent=55 // pred_region
          %s336 = smul.u32 16, %s22
          %s337 = ssub.s32 25, %s336
          %p338 = scmp.lt.s32.totalorder %s337, 16
          %s339 = scalar_select %p338, %s337, 16
          %s340 = smul.u32 128, %s339
          %p341 = scmp.lt.s32.totalorder %s336, 24
          %s342 = scalar_select %p341, %s336, 24
          %s343 = smul.addr %s342, 8
          %s344 = scalar_lea.vmem %s0, %s343
          %s345 = smul.u32 16, %s22
          %s346 = ssub.s32 25, %s345
          %p347 = scmp.lt.s32.totalorder %s346, 16
          %s348 = scalar_select %p347, %s346, 16
          %s349 = smul.u32 128, %s348
        $region60: #{_net_forward_folded.1} parent=55 // pred_fallthru
          _
      $region56: #{_net_forward_folded.1} parent=5 // pred_fallthru
        _
      %p350 = scmp.le.s32.totalorder 1, %s22
      %p351 = scmp.lt.s32.totalorder %s22, 3
      %p352 = pnand %p350, %p351
      %p353 = pneg %p352
      // Predicated region
      $region61: #{_net_forward_folded.1} parent=5 // pred_check
        _
      $region62: #{_net_forward_folded.1} parent=5 // pred_check_branch
        %355 = sbr.rel (%p352) target = $region64
      $region63: #{_net_forward_folded.1} parent=5 // pred_region
        %s356 = ssub.s32 %s22, 1
        %s357 = smul.u32 16, %s27
        %s358 = ssub.s32 25, %s357
        %p359 = scmp.lt.s32.totalorder %s358, 16
        %s360 = scalar_select %p359, %s358, 16
        %s361 = smul.u32 128, %s360
        %p362 = scmp.lt.s32.totalorder %s357, 24
        %s363 = scalar_select %p362, %s357, 24
        %s364 = smul.addr %s363, 8
        %s365 = scalar_lea.vmem %s0, %s364
        %p366 = pneg %p48
        %p367 = pneg %p45
        %p368 = pneg %p69
        %p369 = pneg %p66
        %p370 = pneg %p90
        %p371 = pneg %p87
        %p372 = pneg %p111
        %p373 = pneg %p108
        %p374 = pneg %p132
        %p375 = pneg %p129
        %p376 = pneg %p153
        %p377 = pneg %p150
        %p378 = pneg %p174
        %p379 = pneg %p171
        %p380 = pneg %p195
        %p381 = pneg %p192
        %p382 = pneg %p216
        %p383 = pneg %p213
        %p384 = pneg %p237
        %p385 = pneg %p234
        %p386 = pneg %p258
        %p387 = pneg %p255
        %p388 = pneg %p284
        %p389 = pneg %p281
        %s390 = sand.u32 %s271, 1
        %s391 = scalar_lea.sflag [#allocation4], %s390
        %s392 = sand.u32 %s271, 1
        %s393 = scalar_lea.vmem [#allocation3], %s392
        %s394 = smul.u32 16, %s27
        %s395 = ssub.s32 25, %s394
        %p396 = scmp.lt.s32.totalorder %s395, 16
        %s397 = scalar_select %p396, %s395, 16
        %s398 = smul.u32 128, %s397
        %p399 = scmp.lt.s32.totalorder %s394, 24
        %s400 = scalar_select %p399, %s394, 24
        %s401 = smul.addr %s400, 8
        %s402 = scalar_lea.vmem %s0, %s401
        %s403 = smul.u32 16, %s27
        %s404 = ssub.s32 25, %s403
        %p405 = scmp.lt.s32.totalorder %s404, 16
        %s406 = scalar_select %p405, %s404, 16
        %s407 = smul.u32 128, %s406
        %v408 = vld [vmem:[%s402] sm:$0xff]
        %v409 = vld [vmem:[%s402 + $0x8] sm:$0xff]
        %v410 = vld [vmem:[%s402 + $0x10] sm:$0xff]
        %v411 = vld [vmem:[%s402 + $0x18] sm:$0xff]
        %v412 = vld [vmem:[%s402 + $0x20] sm:$0xff]
        %v413 = vld [vmem:[%s402 + $0x28] sm:$0xff]
        %v414 = vld [vmem:[%s402 + $0x30] sm:$0xff]
        %v415 = vld [vmem:[%s402 + $0x38] sm:$0xff]
        %v416 = vld [vmem:[%s402 + $0x40] sm:$0xff]
        %v417 = vld [vmem:[%s402 + $0x48] sm:$0xff]
        %v418 = vld [vmem:[%s402 + $0x50] sm:$0xff]
        %v419 = vld [vmem:[%s402 + $0x58] sm:$0xff]
        %v420 = vld [vmem:[%s402 + $0x60] sm:$0xff]
        %v421 = vld [vmem:[%s402 + $0x68] sm:$0xff]
        %v422 = vld [vmem:[%s402 + $0x70] sm:$0xff]
        %v423 = vld [vmem:[%s402 + $0x78] sm:$0xff]
        %v424 = vld [vmem:[%s1] sm:$0xff]
        %v425 = vld [vmem:[%s1 + $0x8] sm:$0xff]
        %v426 = vld [vmem:[%s1 + $0x10] sm:$0xff]
        %v427 = vld [vmem:[%s1 + $0x18] sm:$0xff]
        %v428 = vld [vmem:[%s2] sm:$0xff]
        %v429 = vld [vmem:[%s2 + $0x8] sm:$0xff]
        %v430 = vld [vmem:[%s2 + $0x10] sm:$0xff]
        %v431 = vld [vmem:[%s2 + $0x18] sm:$0xff]
        %433 = vset.pattern.permute.xlu0 0
        %434 = vperm.xlu0 %433, %v428
        %v435 = vpop.permute.xlu0 %434
        %438 = vset.pattern.permute.xlu0 0
        %439 = vperm.xlu0 %438, %v429
        %v440 = vpop.permute.xlu0 %439
        %443 = vset.pattern.permute.xlu0 0
        %444 = vperm.xlu0 %443, %v430
        %v445 = vpop.permute.xlu0 %444
        %448 = vset.pattern.permute.xlu0 0
        %449 = vperm.xlu0 %448, %v431
        %v450 = vpop.permute.xlu0 %449
        %vm452 = vcmask 130048
        %v454 = vsel %vm452, %v424, 0
        %v457 = vsel %vm452, %v425, 0
        %v460 = vsel %vm452, %v426, 0
        %v463 = vsel %vm452, %v427, 0
        %v466 = vsel %vm452, %v408, 0
        %v469 = vsel %vm452, %v409, 0
        %v472 = vsel %vm452, %v410, 0
        %v475 = vsel %vm452, %v411, 0
        %v478 = vsel %vm452, %v412, 0
        %v481 = vsel %vm452, %v413, 0
        %v484 = vsel %vm452, %v414, 0
        %v487 = vsel %vm452, %v415, 0
        %v490 = vsel %vm452, %v416, 0
        %v493 = vsel %vm452, %v417, 0
        %v496 = vsel %vm452, %v418, 0
        %v499 = vsel %vm452, %v419, 0
        %v502 = vsel %vm452, %v420, 0
        %v505 = vsel %vm452, %v421, 0
        %v508 = vsel %vm452, %v422, 0
        %v511 = vsel %vm452, %v423, 0
        %513 = vmatprep.subr.mxu0 0.0
        %514 = vmatpush1.xpose.msra.mxu0 %v466
        %515 = vmatprep.subr.mxu0 0.0
        %516 = vmatpush1.xpose.msra.mxu0 %v469
        %517 = vmatprep.subr.mxu0 0.0
        %518 = vmatpush1.xpose.msra.mxu0 %v472
        %519 = vmatprep.subr.mxu0 0.0
        %520 = vmatpush1.xpose.msra.mxu0 %v475
        %521 = vmatprep.subr.mxu0 0.0
        %522 = vmatpush1.xpose.msra.mxu0 %v478
        %523 = vmatprep.subr.mxu0 0.0
        %524 = vmatpush1.xpose.msra.mxu0 %v481
        %525 = vmatprep.subr.mxu0 0.0
        %526 = vmatpush1.xpose.msra.mxu0 %v484
        %527 = vmatprep.subr.mxu0 0.0
        %528 = vmatpush1.xpose.msra.mxu0 %v487
        %529 = vmatprep.subr.mxu0 0.0
        %530 = vmatpush1.xpose.msra.mxu0 %v490
        %531 = vmatprep.subr.mxu0 0.0
        %532 = vmatpush1.xpose.msra.mxu0 %v493
        %533 = vmatprep.subr.mxu0 0.0
        %534 = vmatpush1.xpose.msra.mxu0 %v496
        %535 = vmatprep.subr.mxu0 0.0
        %536 = vmatpush1.xpose.msra.mxu0 %v499
        %537 = vmatprep.subr.mxu0 0.0
        %538 = vmatpush1.xpose.msra.mxu0 %v502
        %539 = vmatprep.subr.mxu0 0.0
        %540 = vmatpush1.xpose.msra.mxu0 %v505
        %541 = vmatprep.subr.mxu0 0.0
        %542 = vmatpush1.xpose.msra.mxu0 %v508
        %543 = vmatprep.subr.mxu0 0.0
        %544 = vmatpush1.xpose.msra.mxu0 %v511
        %545 = vmatprep.subr.mxu0 0.0
        %546 = vmatpush1.xpose.msra.mxu0 0.0
        %547 = vmatprep.subr.mxu0 0.0
        %548 = vmatpush1.xpose.msra.mxu0 0.0
        %549 = vmatprep.subr.mxu0 0.0
        %550 = vmatpush1.xpose.msra.mxu0 0.0
        %551 = vmatprep.subr.mxu0 0.0
        %552 = vmatpush1.xpose.msra.mxu0 0.0
        %553 = vmatprep.subr.mxu0 0.0
        %554 = vmatpush1.xpose.msra.mxu0 0.0
        %555 = vmatprep.subr.mxu0 0.0
        %556 = vmatpush1.xpose.msra.mxu0 0.0
        %557 = vmatprep.subr.mxu0 0.0
        %558 = vmatpush1.xpose.msra.mxu0 0.0
        %559 = vmatprep.subr.mxu0 0.0
        %560 = vmatpush1.xpose.msra.mxu0 0.0
        %561 = vmatprep.subr.mxu0 0.0
        %562 = vmatpush1.xpose.msra.mxu0 0.0
        %563 = vmatprep.subr.mxu0 0.0
        %564 = vmatpush1.xpose.msra.mxu0 0.0
        %565 = vmatprep.subr.mxu0 0.0
        %566 = vmatpush1.xpose.msra.mxu0 0.0
        %567 = vmatprep.subr.mxu0 0.0
        %568 = vmatpush1.xpose.msra.mxu0 0.0
        %569 = vmatprep.subr.mxu0 0.0
        %570 = vmatpush1.xpose.msra.mxu0 0.0
        %571 = vmatprep.subr.mxu0 0.0
        %572 = vmatpush1.xpose.msra.mxu0 0.0
        %573 = vmatprep.subr.mxu0 0.0
        %574 = vmatpush1.xpose.msra.mxu0 0.0
        %575 = vmatprep.subr.mxu0 0.0
        %576 = vmatpush1.xpose.msra.mxu0 0.0
        %577 = vmatprep.mubr.f32.mxu0 0.0
        %578 = vmatmul.mubr.f32.gmra.mrb[0].mxu0 %v454
        %v579 = vpop.f32.mrb[0].mxu0
        %v580 = vadd.f32 %v435, %v579
        %v581 = vpop.f32.mrb[0].mxu0
        %582 = vmatprep.mubr.f32.mxu0 0.0
        %583 = vmatmul.mubr.f32.gmra.mrb[0].mxu0 %v457
        %v584 = vpop.f32.mrb[0].mxu0
        %v585 = vadd.f32 %v440, %v584
        %v586 = vpop.f32.mrb[0].mxu0
        %587 = vmatprep.mubr.f32.mxu0 0.0
        %588 = vmatmul.mubr.f32.gmra.mrb[0].mxu0 %v460
        %v589 = vpop.f32.mrb[0].mxu0
        %v590 = vadd.f32 %v445, %v589
        %v591 = vpop.f32.mrb[0].mxu0
        %592 = vmatprep.mubr.f32.mxu0 0.0
        %593 = vmatmul.mubr.f32.gmra.mrb[0].mxu0 %v463
        %v594 = vpop.f32.mrb[0].mxu0
        %v595 = vadd.f32 %v450, %v594
        %v596 = vpop.f32.mrb[0].mxu0
        %597 = vdwg.mxu0
        %v598 = vmax.f32 %v580, 0.0
        %v599 = vmax.f32 %v585, 0.0
        %v600 = vmax.f32 %v590, 0.0
        %v601 = vmax.f32 %v595, 0.0
        %v602 = vld [vmem:[%s3] sm:$0xff]
        %v603 = vld [vmem:[%s3 + $0x8] sm:$0xff]
        %v604 = vld [vmem:[%s4] sm:$0xff]
        %v605 = vld [vmem:[%s4 + $0x8] sm:$0xff]
        %607 = vset.pattern.permute.xlu0 0
        %608 = vperm.xlu0 %607, %v604
        %v609 = vpop.permute.xlu0 %608
        %612 = vset.pattern.permute.xlu0 0
        %613 = vperm.xlu0 %612, %v605
        %v614 = vpop.permute.xlu0 %613
        %vm616 = vcmask 261120
        %v618 = vsel %vm616, %v602, 0
        %v621 = vsel %vm616, %v603, 0
        %623 = vmatprep.subr.mxu0 0.0
        %624 = vmatpush1.msra.mxu0 %v598
        %625 = vmatprep.subr.mxu0 0.0
        %626 = vmatpush1.msra.mxu0 %v599
        %627 = vmatprep.subr.mxu0 0.0
        %628 = vmatpush1.msra.mxu0 %v600
        %629 = vmatprep.subr.mxu0 0.0
        %630 = vmatpush1.msra.mxu0 %v601
        %631 = vmatprep.subr.mxu0 0.0
        %632 = vmatpush1.msra.mxu0 0.0
        %633 = vmatprep.subr.mxu0 0.0
        %634 = vmatpush1.msra.mxu0 0.0
        %635 = vmatprep.subr.mxu0 0.0
        %636 = vmatpush1.msra.mxu0 0.0
        %637 = vmatprep.subr.mxu0 0.0
        %638 = vmatpush1.msra.mxu0 0.0
        %639 = vmatprep.subr.mxu0 0.0
        %640 = vmatpush1.msra.mxu0 0.0
        %641 = vmatprep.subr.mxu0 0.0
        %642 = vmatpush1.msra.mxu0 0.0
        %643 = vmatprep.subr.mxu0 0.0
        %644 = vmatpush1.msra.mxu0 0.0
        %645 = vmatprep.subr.mxu0 0.0
        %646 = vmatpush1.msra.mxu0 0.0
        %647 = vmatprep.subr.mxu0 0.0
        %648 = vmatpush1.msra.mxu0 0.0
        %649 = vmatprep.subr.mxu0 0.0
        %650 = vmatpush1.msra.mxu0 0.0
        %651 = vmatprep.subr.mxu0 0.0
        %652 = vmatpush1.msra.mxu0 0.0
        %653 = vmatprep.subr.mxu0 0.0
        %654 = vmatpush1.msra.mxu0 0.0
        %655 = vmatprep.subr.mxu0 0.0
        %656 = vmatpush1.msra.mxu0 0.0
        %657 = vmatprep.subr.mxu0 0.0
        %658 = vmatpush1.msra.mxu0 0.0
        %659 = vmatprep.subr.mxu0 0.0
        %660 = vmatpush1.msra.mxu0 0.0
        %661 = vmatprep.subr.mxu0 0.0
        %662 = vmatpush1.msra.mxu0 0.0
        %663 = vmatprep.subr.mxu0 0.0
        %664 = vmatpush1.msra.mxu0 0.0
        %665 = vmatprep.subr.mxu0 0.0
        %666 = vmatpush1.msra.mxu0 0.0
        %667 = vmatprep.subr.mxu0 0.0
        %668 = vmatpush1.msra.mxu0 0.0
        %669 = vmatprep.subr.mxu0 0.0
        %670 = vmatpush1.msra.mxu0 0.0
        %671 = vmatprep.subr.mxu0 0.0
        %672 = vmatpush1.msra.mxu0 0.0
        %673 = vmatprep.subr.mxu0 0.0
        %674 = vmatpush1.msra.mxu0 0.0
        %675 = vmatprep.subr.mxu0 0.0
        %676 = vmatpush1.msra.mxu0 0.0
        %677 = vmatprep.subr.mxu0 0.0
        %678 = vmatpush1.msra.mxu0 0.0
        %679 = vmatprep.subr.mxu0 0.0
        %680 = vmatpush1.msra.mxu0 0.0
        %681 = vmatprep.subr.mxu0 0.0
        %682 = vmatpush1.msra.mxu0 0.0
        %683 = vmatprep.subr.mxu0 0.0
        %684 = vmatpush1.msra.mxu0 0.0
        %685 = vmatprep.subr.mxu0 0.0
        %686 = vmatpush1.msra.mxu0 0.0
        %687 = vmatprep.mubr.f32.mxu0 0.0
        %688 = vmatmul.mubr.f32.gmra.mrb[0].mxu0 %v618
        %v689 = vpop.f32.mrb[0].mxu0
        %v690 = vadd.f32 %v609, %v689
        %v691 = vpop.f32.mrb[0].mxu0
        %692 = vmatprep.mubr.f32.mxu0 0.0
        %693 = vmatmul.mubr.f32.gmra.mrb[0].mxu0 %v621
        %v694 = vpop.f32.mrb[0].mxu0
        %v695 = vadd.f32 %v614, %v694
        %v696 = vpop.f32.mrb[0].mxu0
        %697 = vdwg.mxu0
        %v698 = vmax.f32 %v690, 0.0
        %v699 = vmax.f32 %v695, 0.0
        %v700 = vld [vmem:[%s5] sm:$0xff]
        %v701 = vld [vmem:[%s5 + $0x8] sm:$0xff]
        %v702 = vld [vmem:[%s5 + $0x10] sm:$0xff]
        %v703 = vld [vmem:[%s5 + $0x18] sm:$0xff]
        %v704 = vld [vmem:[%s6] sm:$0xff]
        %v705 = vld [vmem:[%s6 + $0x8] sm:$0xff]
        %v706 = vld [vmem:[%s6 + $0x10] sm:$0xff]
        %v707 = vld [vmem:[%s6 + $0x18] sm:$0xff]
        %709 = vset.pattern.permute.xlu0 0
        %710 = vperm.xlu0 %709, %v704
        %v711 = vpop.permute.xlu0 %710
        %714 = vset.pattern.permute.xlu0 0
        %715 = vperm.xlu0 %714, %v705
        %v716 = vpop.permute.xlu0 %715
        %719 = vset.pattern.permute.xlu0 0
        %720 = vperm.xlu0 %719, %v706
        %v721 = vpop.permute.xlu0 %720
        %724 = vset.pattern.permute.xlu0 0
        %725 = vperm.xlu0 %724, %v707
        %v726 = vpop.permute.xlu0 %725
        %v729 = vsel %vm452, %v700, 0
        %v732 = vsel %vm452, %v701, 0
        %v735 = vsel %vm452, %v702, 0
        %v738 = vsel %vm452, %v703, 0
        %740 = vmatprep.subr.mxu0 0.0
        %741 = vmatpush1.msra.mxu0 %v698
        %742 = vmatprep.subr.mxu0 0.0
        %743 = vmatpush1.msra.mxu0 %v699
        %744 = vmatprep.subr.mxu0 0.0
        %745 = vmatpush1.msra.mxu0 0.0
        %746 = vmatprep.subr.mxu0 0.0
        %747 = vmatpush1.msra.mxu0 0.0
        %748 = vmatprep.subr.mxu0 0.0
        %749 = vmatpush1.msra.mxu0 0.0
        %750 = vmatprep.subr.mxu0 0.0
        %751 = vmatpush1.msra.mxu0 0.0
        %752 = vmatprep.subr.mxu0 0.0
        %753 = vmatpush1.msra.mxu0 0.0
        %754 = vmatprep.subr.mxu0 0.0
        %755 = vmatpush1.msra.mxu0 0.0
        %756 = vmatprep.subr.mxu0 0.0
        %757 = vmatpush1.msra.mxu0 0.0
        %758 = vmatprep.subr.mxu0 0.0
        %759 = vmatpush1.msra.mxu0 0.0
        %760 = vmatprep.subr.mxu0 0.0
        %761 = vmatpush1.msra.mxu0 0.0
        %762 = vmatprep.subr.mxu0 0.0
        %763 = vmatpush1.msra.mxu0 0.0
        %764 = vmatprep.subr.mxu0 0.0
        %765 = vmatpush1.msra.mxu0 0.0
        %766 = vmatprep.subr.mxu0 0.0
        %767 = vmatpush1.msra.mxu0 0.0
        %768 = vmatprep.subr.mxu0 0.0
        %769 = vmatpush1.msra.mxu0 0.0
        %770 = vmatprep.subr.mxu0 0.0
        %771 = vmatpush1.msra.mxu0 0.0
        %772 = vmatprep.subr.mxu0 0.0
        %773 = vmatpush1.msra.mxu0 0.0
        %774 = vmatprep.subr.mxu0 0.0
        %775 = vmatpush1.msra.mxu0 0.0
        %776 = vmatprep.subr.mxu0 0.0
        %777 = vmatpush1.msra.mxu0 0.0
        %778 = vmatprep.subr.mxu0 0.0
        %779 = vmatpush1.msra.mxu0 0.0
        %780 = vmatprep.subr.mxu0 0.0
        %781 = vmatpush1.msra.mxu0 0.0
        %782 = vmatprep.subr.mxu0 0.0
        %783 = vmatpush1.msra.mxu0 0.0
        %784 = vmatprep.subr.mxu0 0.0
        %785 = vmatpush1.msra.mxu0 0.0
        %786 = vmatprep.subr.mxu0 0.0
        %787 = vmatpush1.msra.mxu0 0.0
        %788 = vmatprep.subr.mxu0 0.0
        %789 = vmatpush1.msra.mxu0 0.0
        %790 = vmatprep.subr.mxu0 0.0
        %791 = vmatpush1.msra.mxu0 0.0
        %792 = vmatprep.subr.mxu0 0.0
        %793 = vmatpush1.msra.mxu0 0.0
        %794 = vmatprep.subr.mxu0 0.0
        %795 = vmatpush1.msra.mxu0 0.0
        %796 = vmatprep.subr.mxu0 0.0
        %797 = vmatpush1.msra.mxu0 0.0
        %798 = vmatprep.subr.mxu0 0.0
        %799 = vmatpush1.msra.mxu0 0.0
        %800 = vmatprep.subr.mxu0 0.0
        %801 = vmatpush1.msra.mxu0 0.0
        %802 = vmatprep.subr.mxu0 0.0
        %803 = vmatpush1.msra.mxu0 0.0
        %804 = vmatprep.mubr.f32.mxu0 0.0
        %805 = vmatmul.mubr.f32.gmra.mrb[0].mxu0 %v729
        %v806 = vpop.f32.mrb[0].mxu0
        %v807 = vadd.f32 %v711, %v806
        %v808 = vpop.f32.mrb[0].mxu0
        %809 = vmatprep.mubr.f32.mxu0 0.0
        %810 = vmatmul.mubr.f32.gmra.mrb[0].mxu0 %v732
        %v811 = vpop.f32.mrb[0].mxu0
        %v812 = vadd.f32 %v716, %v811
        %v813 = vpop.f32.mrb[0].mxu0
        %814 = vmatprep.mubr.f32.mxu0 0.0
        %815 = vmatmul.mubr.f32.gmra.mrb[0].mxu0 %v735
        %v816 = vpop.f32.mrb[0].mxu0
        %v817 = vadd.f32 %v721, %v816
        %v818 = vpop.f32.mrb[0].mxu0
        %819 = vmatprep.mubr.f32.mxu0 0.0
        %820 = vmatmul.mubr.f32.gmra.mrb[0].mxu0 %v738
        %v821 = vpop.f32.mrb[0].mxu0
        %v822 = vadd.f32 %v726, %v821
        %v823 = vpop.f32.mrb[0].mxu0
        %824 = vdwg.mxu0
        %v825 = vmax.f32 %v807, 0.0
        %v826 = vmax.f32 %v812, 0.0
        %v827 = vmax.f32 %v817, 0.0
        %v828 = vmax.f32 %v822, 0.0
        %v829 = vld [vmem:[%s7] sm:$0xff]
        %v830 = vld [vmem:[%s7 + $0x8] sm:$0xff]
        %v831 = vld [vmem:[%s8] sm:$0xff]
        %v832 = vld [vmem:[%s8 + $0x8] sm:$0xff]
        %834 = vset.pattern.permute.xlu0 0
        %835 = vperm.xlu0 %834, %v831
        %v836 = vpop.permute.xlu0 %835
        %839 = vset.pattern.permute.xlu0 0
        %840 = vperm.xlu0 %839, %v832
        %v841 = vpop.permute.xlu0 %840
        %v844 = vsel %vm616, %v829, 0
        %v847 = vsel %vm616, %v830, 0
        %849 = vmatprep.subr.mxu0 0.0
        %850 = vmatpush1.msra.mxu0 %v825
        %851 = vmatprep.subr.mxu0 0.0
        %852 = vmatpush1.msra.mxu0 %v826
        %853 = vmatprep.subr.mxu0 0.0
        %854 = vmatpush1.msra.mxu0 %v827
        %855 = vmatprep.subr.mxu0 0.0
        %856 = vmatpush1.msra.mxu0 %v828
        %857 = vmatprep.subr.mxu0 0.0
        %858 = vmatpush1.msra.mxu0 0.0
        %859 = vmatprep.subr.mxu0 0.0
        %860 = vmatpush1.msra.mxu0 0.0
        %861 = vmatprep.subr.mxu0 0.0
        %862 = vmatpush1.msra.mxu0 0.0
        %863 = vmatprep.subr.mxu0 0.0
        %864 = vmatpush1.msra.mxu0 0.0
        %865 = vmatprep.subr.mxu0 0.0
        %866 = vmatpush1.msra.mxu0 0.0
        %867 = vmatprep.subr.mxu0 0.0
        %868 = vmatpush1.msra.mxu0 0.0
        %869 = vmatprep.subr.mxu0 0.0
        %870 = vmatpush1.msra.mxu0 0.0
        %871 = vmatprep.subr.mxu0 0.0
        %872 = vmatpush1.msra.mxu0 0.0
        %873 = vmatprep.subr.mxu0 0.0
        %874 = vmatpush1.msra.mxu0 0.0
        %875 = vmatprep.subr.mxu0 0.0
        %876 = vmatpush1.msra.mxu0 0.0
        %877 = vmatprep.subr.mxu0 0.0
        %878 = vmatpush1.msra.mxu0 0.0
        %879 = vmatprep.subr.mxu0 0.0
        %880 = vmatpush1.msra.mxu0 0.0
        %881 = vmatprep.subr.mxu0 0.0
        %882 = vmatpush1.msra.mxu0 0.0
        %883 = vmatprep.subr.mxu0 0.0
        %884 = vmatpush1.msra.mxu0 0.0
        %885 = vmatprep.subr.mxu0 0.0
        %886 = vmatpush1.msra.mxu0 0.0
        %887 = vmatprep.subr.mxu0 0.0
        %888 = vmatpush1.msra.mxu0 0.0
        %889 = vmatprep.subr.mxu0 0.0
        %890 = vmatpush1.msra.mxu0 0.0
        %891 = vmatprep.subr.mxu0 0.0
        %892 = vmatpush1.msra.mxu0 0.0
        %893 = vmatprep.subr.mxu0 0.0
        %894 = vmatpush1.msra.mxu0 0.0
        %895 = vmatprep.subr.mxu0 0.0
        %896 = vmatpush1.msra.mxu0 0.0
        %897 = vmatprep.subr.mxu0 0.0
        %898 = vmatpush1.msra.mxu0 0.0
        %899 = vmatprep.subr.mxu0 0.0
        %900 = vmatpush1.msra.mxu0 0.0
        %901 = vmatprep.subr.mxu0 0.0
        %902 = vmatpush1.msra.mxu0 0.0
        %903 = vmatprep.subr.mxu0 0.0
        %904 = vmatpush1.msra.mxu0 0.0
        %905 = vmatprep.subr.mxu0 0.0
        %906 = vmatpush1.msra.mxu0 0.0
        %907 = vmatprep.subr.mxu0 0.0
        %908 = vmatpush1.msra.mxu0 0.0
        %909 = vmatprep.subr.mxu0 0.0
        %910 = vmatpush1.msra.mxu0 0.0
        %911 = vmatprep.subr.mxu0 0.0
        %912 = vmatpush1.msra.mxu0 0.0
        %913 = vmatprep.mubr.f32.mxu0 0.0
        %914 = vmatmul.mubr.f32.gmra.mrb[0].mxu0 %v844
        %v915 = vpop.f32.mrb[0].mxu0
        %v916 = vadd.f32 %v836, %v915
        %v917 = vpop.f32.mrb[0].mxu0
        %918 = vmatprep.mubr.f32.mxu0 0.0
        %919 = vmatmul.mubr.f32.gmra.mrb[0].mxu0 %v847
        %v920 = vpop.f32.mrb[0].mxu0
        %v921 = vadd.f32 %v841, %v920
        %v922 = vpop.f32.mrb[0].mxu0
        %923 = vdwg.mxu0
        %v924 = vmax.f32 %v916, 0.0
        %v925 = vmax.f32 %v921, 0.0
        %v926 = vld [vmem:[%s9] sm:$0x1]
        %v927 = vld [vmem:[#allocation2] sm:$0x1]
        %929 = vset.pattern.permute.xlu0 0
        %930 = vperm.xlu0 %929, %v927
        %v931 = vpop.permute.xlu0 %930
        %v933 = vlaneseq
        %v934 = vshrl.u32 %v933, 7
        %v935 = vsub.s32 0, %v934
        %v936 = vrot.slane %v931, %v935
        %v938 = vsel %vm452, %v926, 0
        %940 = vmatprep.subr.mxu0 0.0
        %941 = vmatpush1.msra.mxu0 %v924
        %942 = vmatprep.subr.mxu0 0.0
        %943 = vmatpush1.msra.mxu0 %v925
        %944 = vmatprep.subr.mxu0 0.0
        %945 = vmatpush1.msra.mxu0 0.0
        %946 = vmatprep.subr.mxu0 0.0
        %947 = vmatpush1.msra.mxu0 0.0
        %948 = vmatprep.subr.mxu0 0.0
        %949 = vmatpush1.msra.mxu0 0.0
        %950 = vmatprep.subr.mxu0 0.0
        %951 = vmatpush1.msra.mxu0 0.0
        %952 = vmatprep.subr.mxu0 0.0
        %953 = vmatpush1.msra.mxu0 0.0
        %954 = vmatprep.subr.mxu0 0.0
        %955 = vmatpush1.msra.mxu0 0.0
        %956 = vmatprep.subr.mxu0 0.0
        %957 = vmatpush1.msra.mxu0 0.0
        %958 = vmatprep.subr.mxu0 0.0
        %959 = vmatpush1.msra.mxu0 0.0
        %960 = vmatprep.subr.mxu0 0.0
        %961 = vmatpush1.msra.mxu0 0.0
        %962 = vmatprep.subr.mxu0 0.0
        %963 = vmatpush1.msra.mxu0 0.0
        %964 = vmatprep.subr.mxu0 0.0
        %965 = vmatpush1.msra.mxu0 0.0
        %966 = vmatprep.subr.mxu0 0.0
        %967 = vmatpush1.msra.mxu0 0.0
        %968 = vmatprep.subr.mxu0 0.0
        %969 = vmatpush1.msra.mxu0 0.0
        %970 = vmatprep.subr.mxu0 0.0
        %971 = vmatpush1.msra.mxu0 0.0
        %972 = vmatprep.subr.mxu0 0.0
        %973 = vmatpush1.msra.mxu0 0.0
        %974 = vmatprep.subr.mxu0 0.0
        %975 = vmatpush1.msra.mxu0 0.0
        %976 = vmatprep.subr.mxu0 0.0
        %977 = vmatpush1.msra.mxu0 0.0
        %978 = vmatprep.subr.mxu0 0.0
        %979 = vmatpush1.msra.mxu0 0.0
        %980 = vmatprep.subr.mxu0 0.0
        %981 = vmatpush1.msra.mxu0 0.0
        %982 = vmatprep.subr.mxu0 0.0
        %983 = vmatpush1.msra.mxu0 0.0
        %984 = vmatprep.subr.mxu0 0.0
        %985 = vmatpush1.msra.mxu0 0.0
        %986 = vmatprep.subr.mxu0 0.0
        %987 = vmatpush1.msra.mxu0 0.0
        %988 = vmatprep.subr.mxu0 0.0
        %989 = vmatpush1.msra.mxu0 0.0
        %990 = vmatprep.subr.mxu0 0.0
        %991 = vmatpush1.msra.mxu0 0.0
        %992 = vmatprep.subr.mxu0 0.0
        %993 = vmatpush1.msra.mxu0 0.0
        %994 = vmatprep.subr.mxu0 0.0
        %995 = vmatpush1.msra.mxu0 0.0
        %996 = vmatprep.subr.mxu0 0.0
        %997 = vmatpush1.msra.mxu0 0.0
        %998 = vmatprep.subr.mxu0 0.0
        %999 = vmatpush1.msra.mxu0 0.0
        %1000 = vmatprep.subr.mxu0 0.0
        %1001 = vmatpush1.msra.mxu0 0.0
        %1002 = vmatprep.subr.mxu0 0.0
        %1003 = vmatpush1.msra.mxu0 0.0
        %1004 = vmatprep.mubr.f32.mxu0 0.0
        %1005 = vmatmul.mubr.f32.gmra.mrb[0].mxu0 %v938
        %v1006 = vpop.f32.mrb[0].mxu0
        %v1007 = vadd.f32 %v936, %v1006
        %v1008 = vpop.f32.mrb[0].mxu0
        %1009 = vdwg.mxu0
        %1010 = vst [vmem:[%s393] sm:$0x1] %v1007
        %s1011 = sand.u32 %s271, 1
        %s1012 = scalar_lea.sflag [#allocation4], %s1011
        %s1013 = sand.u32 %s271, 1
        %s1014 = scalar_lea.vmem [#allocation3], %s1013
        // Predicated region
        $region65: #{_net_forward_folded.1} parent=63 // pred_check
          %p1015 = pneg %p281
        $region66: #{_net_forward_folded.1} parent=63 // pred_check_branch
          %1017 = sbr.rel (%p1015) target = $region68
        $region67: #{_net_forward_folded.1} parent=63 // pred_region
          %s1019 = ssub.s32 16, 16
          %1020 = vsyncadd %s1012, %s1019
          %s1021 = smul.addr %s27, 16
          %s1022 = scalar_lea.hbm %s11, %s1021
          %s1024 = sshll.u32 %s1014, 4
          %s1025 = int_to_ptr.vmem [resolvable:$true] %s1024
          %1027 = dma.vmem_to_hbm [thread:$0]  %s1025, 16, %s1022, %s1012
        $region68: #{_net_forward_folded.1} parent=63 // pred_fallthru
          _
      $region64: #{_net_forward_folded.1} parent=5 // pred_fallthru
        _
      %p1028 = scmp.le.s32.totalorder 2, %s22
      // Predicated region
      $region69: #{_net_forward_folded.1} parent=5 // pred_check
        %p1029 = pneg %p1028
      $region70: #{_net_forward_folded.1} parent=5 // pred_check_branch
        %1031 = sbr.rel (%p1029) target = $region72
      $region71: #{_net_forward_folded.1} parent=5 // pred_region
        %s1032 = ssub.s32 %s22, 2
        // Predicated region
        $region73: #{_net_forward_folded.1} parent=71 // pred_check
          %p1033 = pneg %p287
        $region74: #{_net_forward_folded.1} parent=71 // pred_check_branch
          %1035 = sbr.rel (%p1033) target = $region76
        $region75: #{_net_forward_folded.1} parent=71 // pred_region
          %s1036 = sand.u32 %s272, 1
          %s1037 = scalar_lea.sflag [#allocation4], %s1036
          %s1038 = sand.u32 %s272, 1
          %s1039 = scalar_lea.vmem [#allocation3], %s1038
          %1040 = dma.done %s1037, 16
        $region76: #{_net_forward_folded.1} parent=71 // pred_fallthru
          _
      $region72: #{_net_forward_folded.1} parent=5 // pred_fallthru
        _
    $region6: #{_net_forward_folded.1} parent=1 // loop_footer
      %s26 = sadd.s32 1, %s22
    $region7: #{_net_forward_folded.1} parent=1 // loop_footer_branch
      %21 = sbr.rel target = $region3
    $region8: #{_net_forward_folded.1} parent=1 // loop_exit
      _
    %1041 = vsyncpa [#allocation4], 1
    %s1042 = scalar_lea.sflag [#allocation4], 1
    %1043 = vsyncpa %s1042, 1

</llo_original>
